<compile_context>
chip_gen: v7x
topology: tpu7x:2x2x1
jax: 0.10.0
libtpu: 0.0.40
codegen_flags: <defaults>
</compile_context>

<pallas_src>
import functools

import jax
import jax.numpy as jnp
from jax.experimental import pallas as pl
from jax.experimental.pallas import tpu as pltpu


def _round_up(x, m):
    return ((x + m - 1) // m) * m


def _cdiv(a, b):
    return -(-a // b)


def _tiles(M, K, tm_max=256, tk_max=512):
    """Pick (tm, tk, Mp, Kp) so per-tile padding stays within one granule.

    Row granule is 16 (bf16 packs 2 rows per sublane), K granule is 128 (lanes).
    """
    Mp0 = _round_up(M, 16)
    nm = _cdiv(Mp0, tm_max)
    tm = _round_up(_cdiv(Mp0, nm), 16)
    Mp = nm * tm
    Kp0 = _round_up(K, 128)
    nk = _cdiv(Kp0, tk_max)
    tk = _round_up(_cdiv(Kp0, nk), 128)
    Kp = nk * tk
    return tm, tk, Mp, Kp


def _pad_bf16(a, Rp, Cp):
    R, C = a.shape
    if (R, C) == (Rp, Cp) and a.dtype == jnp.bfloat16:
        return a
    return jnp.zeros((Rp, Cp), jnp.bfloat16).at[:R, :C].set(a.astype(jnp.bfloat16))


def _refit_bf16(a_p, Rp, Cp, R, C):
    """Re-shape an already zero-padded bf16 array to a (Rp, Cp) padded layout."""
    if a_p.shape == (Rp, Cp):
        return a_p
    return _pad_bf16(a_p[:R, :C], Rp, Cp)


# ----------------------------------------------------------------------------
# Tiled matmul kernels: OUT = maybe_relu(A @ B) [@ W], bf16 MXU, f32 accumulation
# ----------------------------------------------------------------------------
def _mm_kernel(a_ref, b_ref, o_ref, acc_ref, *, relu, tk, b_resident):
    k = pl.program_id(1)

    @pl.when(k == 0)
    def _():
        acc_ref[...] = jnp.zeros_like(acc_ref)

    if b_resident:
        off = pl.multiple_of(k * tk, 128)
        b_blk = b_ref[pl.ds(off, tk), :]
    else:
        b_blk = b_ref[...]
    acc_ref[...] += jnp.dot(a_ref[...], b_blk, preferred_element_type=jnp.float32)

    @pl.when(k == pl.num_programs(1) - 1)
    def _():
        r = acc_ref[...]
        if relu:
            r = jnp.maximum(r, 0.0)
        o_ref[...] = r.astype(o_ref.dtype)


def _mm_fused_kernel(a_ref, b_ref, w_ref, o_ref, acc_ref, *, relu, tk, b_resident):
    k = pl.program_id(1)

    @pl.when(k == 0)
    def _():
        acc_ref[...] = jnp.zeros_like(acc_ref)

    if b_resident:
        off = pl.multiple_of(k * tk, 128)
        b_blk = b_ref[pl.ds(off, tk), :]
    else:
        b_blk = b_ref[...]
    acc_ref[...] += jnp.dot(a_ref[...], b_blk, preferred_element_type=jnp.float32)

    @pl.when(k == pl.num_programs(1) - 1)
    def _():
        r = acc_ref[...]
        if relu:
            r = jnp.maximum(r, 0.0)
        # Epilogue weight matmul (W resident in VMEM): (A @ B) @ W
        r = jnp.dot(r.astype(jnp.bfloat16), w_ref[...],
                    preferred_element_type=jnp.float32)
        o_ref[...] = r.astype(o_ref.dtype)


_B_RESIDENT_BYTES = 8 << 20   # keep B fully resident in VMEM when <= 8 MiB (bf16)


def _matmul_padded(a_p, b_p, *, tm, tk, relu=False, w_p=None,
                   out_dtype=jnp.float32):
    """OUT_p = maybe_relu(A_p @ B_p) [@ W_p] on pre-padded bf16 operands.

    A_p: [Mp, Kp] (Mp % tm == 0, Kp % tk == 0), B_p: [Kp, Cp] (Cp % 128 == 0),
    W_p (optional): [Cp, Cw] (Cw % 128 == 0).  f32 VMEM accumulation, row axis
    "parallel" (megacore), K reduction axis last and "arbitrary".
    """
    Mp, Kp = a_p.shape
    Kp2, Cp = b_p.shape
    assert Kp == Kp2 and Mp % tm == 0 and Kp % tk == 0 and Cp % 128 == 0

    b_resident = (Kp * Cp * 2) <= _B_RESIDENT_BYTES
    grid = (Mp // tm, Kp // tk)
    fused = w_p is not None
    Cout = w_p.shape[1] if fused else Cp
    out_itemsize = jnp.dtype(out_dtype).itemsize

    in_specs = [pl.BlockSpec((tm, tk), lambda i, k: (i, k))]       # A tiles
    if b_resident:
        # Full-array block, constant index -> B is DMA'd once and stays resident.
        in_specs.append(pl.BlockSpec((Kp, Cp), lambda i, k: (0, 0)))
    else:
        in_specs.append(pl.BlockSpec((tk, Cp), lambda i, k: (k, 0)))
    operands = [a_p, b_p]

    if fused:
        assert w_p.shape[0] == Cp and w_p.shape[1] % 128 == 0
        in_specs.append(pl.BlockSpec((Cp, Cout), lambda i, k: (0, 0)))   # resident W
        operands.append(w_p)
        kernel = functools.partial(_mm_fused_kernel, relu=relu, tk=tk,
                                   b_resident=b_resident)
    else:
        kernel = functools.partial(_mm_kernel, relu=relu, tk=tk,
                                   b_resident=b_resident)

    flops = 2 * Mp * Kp * Cp + (2 * Mp * Cp * Cout if fused else 0)
    a_bytes = Mp * Kp * 2
    b_bytes = Kp * Cp * 2 if b_resident else grid[0] * Kp * Cp * 2
    w_bytes = Cp * Cout * 2 if fused else 0
    cost = pl.CostEstimate(
        flops=flops, transcendentals=0,
        bytes_accessed=a_bytes + b_bytes + w_bytes + Mp * Cout * out_itemsize)

    vmem_est = (2 * tm * tk * 2                                     # A, double-buffered
                + (Kp * Cp * 2 if b_resident else 2 * tk * Cp * 2)  # B
                + tm * Cp * 4                                       # f32 accumulator
                + 2 * tm * Cout * out_itemsize                      # out, double-buffered
                + w_bytes)
    vmem_limit = min(max(vmem_est + (8 << 20), 32 << 20), 100 << 20)

    return pl.pallas_call(
        kernel,
        out_shape=jax.ShapeDtypeStruct((Mp, Cout), out_dtype),
        grid_spec=pltpu.PrefetchScalarGridSpec(
            num_scalar_prefetch=0,
            grid=grid,
            in_specs=in_specs,
            out_specs=pl.BlockSpec((tm, Cout), lambda i, k: (i, 0)),
            scratch_shapes=[pltpu.VMEM((tm, Cp), jnp.float32)],
        ),
        compiler_params=pltpu.CompilerParams(
            dimension_semantics=("parallel", "arbitrary"),
            vmem_limit_bytes=vmem_limit,
        ),
        cost_estimate=cost,
    )(*operands)


def pallas_matmul(a, b, *, relu=False, out_dtype=jnp.float32,
                  tm_max=256, tk_max=512):
    """C = maybe_relu(A @ B); pads/casts operands, then calls the padded kernel."""
    M, K = a.shape
    K2, C = b.shape
    assert K == K2, (a.shape, b.shape)
    tm, tk, Mp, Kp = _tiles(M, K, tm_max, tk_max)
    Cp = _round_up(C, 128)
    a_p = _pad_bf16(a, Mp, Kp)
    b_p = _pad_bf16(b, Kp, Cp)
    out = _matmul_padded(a_p, b_p, tm=tm, tk=tk, relu=relu, out_dtype=out_dtype)
    return out[:M, :C]


# ----------------------------------------------------------------------------
# Plain-JAX glue: graph -> dense normalized adjacency, pooling matrix
# ----------------------------------------------------------------------------
def build_norm_adj(edge_index, edge_weight, num_nodes):
    """A_hat = D^{-1/2} (A + I) D^{-1/2}, A built from (dst <- src) edges (f32)."""
    src, dst = edge_index[0], edge_index[1]
    A = jnp.zeros((num_nodes, num_nodes), jnp.float32)
    A = A.at[dst, src].add(edge_weight)
    A = A + jnp.eye(num_nodes, dtype=jnp.float32)   # self loops
    deg = jnp.sum(A, axis=1)
    dinv = jnp.where(deg > 0, 1.0 / jnp.sqrt(deg), 0.0)
    return A * dinv[:, None] * dinv[None, :]


def build_mean_pool(batch, num_graphs, num_nodes):
    """P[g, n] = 1 / |graph g|  if batch[n] == g else 0."""
    onehot = (batch[None, :] == jnp.arange(num_graphs)[:, None]).astype(jnp.float32)
    counts = jnp.maximum(jnp.sum(onehot, axis=1, keepdims=True), 1.0)
    return onehot / counts


# ----------------------------------------------------------------------------
# Encoder
# ----------------------------------------------------------------------------
class Encoder:
    """JAX/Pallas port of the PyTorch `Encoder` contrastive wrapper.

    encoder   = 2-layer GCN (weights w1, w2, no bias) + per-graph mean pooling
    augmentor = (FeatureMasking(feat_mask), EdgeRemoving(edge_keep))
    """

    def __init__(self, w1, w2, feat_mask, edge_keep, num_graphs):
        self.w1 = w1
        self.w2 = w2
        self.feat_mask = feat_mask
        self.edge_keep = edge_keep
        self.num_graphs = num_graphs

    def forward(self, x, edge_index, batch):
        N, _ = x.shape
        H = self.w1.shape[1]

        # -------- augmentations (GraphCL) --------
        # aug1 = FeatureMasking: x1 = x * feat_mask, edges unchanged (weight 1).
        # aug2 = EdgeRemoving:   x2 = x, dropped edges get weight 0.
        ew_ones = jnp.ones((edge_index.shape[1],), jnp.float32)
        ew_drop = self.edge_keep.astype(jnp.float32)

        a_shared = build_norm_adj(edge_index, ew_ones, N)   # base + feat-masked view
        a_drop = build_norm_adj(edge_index, ew_drop, N)     # edge-removed view
        pool = build_mean_pool(batch, self.num_graphs, N)

        # Tiles shared by every N x N aggregation call (both layers, both views).
        tm_a, tk_a, Np_m, Np_k = _tiles(N, N, tm_max=512, tk_max=1024)

        # Pad + cast the adjacencies to bf16 ONCE; reused across both GCN layers.
        a_shared_p = _pad_bf16(a_shared, Np_m, Np_k)
        a_drop_p = _pad_bf16(a_drop, Np_m, Np_k)

        # -------- merged feature transform: X @ [W1 | fm*W1 | W1] -> [N, 3H] -----
        # x1 @ W1 == x @ (feat_mask[:, None] * W1), so the base, feature-masked and
        # edge-removed views share one lane-dense matmul.
        w1_all = jnp.concatenate(
            [self.w1, self.feat_mask[:, None] * self.w1, self.w1], axis=1)
        xw_all = pallas_matmul(x, w1_all, out_dtype=jnp.bfloat16)    # [N, 3H]
        xw_shared = xw_all[:, :2 * H]     # [base | feature-masked]
        xw_drop = xw_all[:, 2 * H:]       # edge-removed view

        # Layer-2 weights, padded once; applied inside the aggregation epilogue.
        Hp = _round_up(H, 128)
        H2p = _round_up(2 * H, 128)
        zH = jnp.zeros_like(self.w2)
        w2_block = jnp.concatenate(
            [jnp.concatenate([self.w2, zH], axis=1),
             jnp.concatenate([zH, self.w2], axis=1)], axis=0)        # [2H, 2H]
        w2_block_p = _pad_bf16(w2_block, H2p, H2p)
        w2_p = _pad_bf16(self.w2, Hp, Hp)

        # -------- base + feature-masked views (shared adjacency, [N, 2H]) --------
        h1_s_p = _matmul_padded(
            a_shared_p, _pad_bf16(xw_shared, Np_k, H2p),
            tm=tm_a, tk=tk_a, relu=True, out_dtype=jnp.bfloat16)     # relu(A @ XW)
        z_stack_p = _matmul_padded(
            a_shared_p, _refit_bf16(h1_s_p, Np_k, H2p, N, 2 * H),
            tm=tm_a, tk=tk_a, w_p=w2_block_p, out_dtype=jnp.float32)  # (A @ h1) @ W2
        z_stack = z_stack_p[:N, :2 * H]
        z, z1 = z_stack[:, :H], z_stack[:, H:]

        # -------- edge-removed view (different adjacency) --------
        h1_d_p = _matmul_padded(
            a_drop_p, _pad_bf16(xw_drop, Np_k, Hp),
            tm=tm_a, tk=tk_a, relu=True, out_dtype=jnp.bfloat16)
        z2_p = _matmul_padded(
            a_drop_p, _refit_bf16(h1_d_p, Np_k, Hp, N, H),
            tm=tm_a, tk=tk_a, w_p=w2_p, out_dtype=jnp.float32)
        z2 = z2_p[:N, :H]

        # -------- mean pooling in plain f32 XLA (tiny; keeps z in f32) --------
        g = pool @ z
        g1 = pool @ z1
        g2 = pool @ z2

        return (z, g, z1, z2, g1, g2)


# ----------------------------------------------------------------------------
# Reference (pure jnp, f32) for a loose correctness check
# ----------------------------------------------------------------------------
def _reference_forward(x, edge_index, batch, w1, w2, feat_mask, edge_keep, num_graphs):
    N = x.shape[0]

    def gcn(a, xx):
        h1 = jnp.maximum(a @ (xx @ w1), 0.0)
        return a @ (h1 @ w2)

    a0 = build_norm_adj(edge_index, jnp.ones((edge_index.shape[1],), jnp.float32), N)
    a2 = build_norm_adj(edge_index, edge_keep.astype(jnp.float32), N)
    pool = build_mean_pool(batch, num_graphs, N)
    z = gcn(a0, x)
    z1 = gcn(a0, x * feat_mask[None, :])
    z2 = gcn(a2, x)
    return z, pool @ z, z1, z2, pool @ z1, pool @ z2


# ----------------------------------------------------------------------------
# Demo
# ----------------------------------------------------------------------------
if __name__ == "__main__":
    N, F, H, Gn, E = 16, 32, 64, 2, 48

    key = jax.random.PRNGKey(0)
    kx, ke, kw1, kw2, km, kd = jax.random.split(key, 6)

    x = jax.random.normal(kx, (N, F), jnp.float32)
    edge_index = jax.random.randint(ke, (2, E), 0, N)
    batch = jnp.repeat(jnp.arange(Gn), N // Gn)

    w1 = jax.random.normal(kw1, (F, H), jnp.float32) * (1.0 / jnp.sqrt(F))
    w2 = jax.random.normal(kw2, (H, H), jnp.float32) * (1.0 / jnp.sqrt(H))
    feat_mask = jax.random.bernoulli(km, 0.7, (F,)).astype(jnp.float32)  # keep ~70% feats
    edge_keep = jax.random.bernoulli(kd, 0.8, (E,))                      # keep ~80% edges

    model = Encoder(w1, w2, feat_mask, edge_keep, Gn)
    outs = model.forward(x, edge_index, batch)
    outs = jax.block_until_ready(outs)

    z, g, z1, z2, g1, g2 = outs
    assert z.shape == (N, H) and g.shape == (Gn, H)
    assert z1.shape == (N, H) and z2.shape == (N, H)
    assert g1.shape == (Gn, H) and g2.shape == (Gn, H)

    ref = _reference_forward(x, edge_index, batch, w1, w2, feat_mask, edge_keep, Gn)
    for name, got, exp in zip(("z", "g", "z1", "z2", "g1", "g2"), outs, ref):
        err = float(jnp.max(jnp.abs(got - exp)))
        assert err < 0.2, (name, err)   # loose bound: bf16 MXU operands, f32 accum

    print("KERNEL_OK")
</pallas_src>

<mosaic_0001>
module attributes {stable_mosaic.version = 11 : i64} {
  func.func @_mm_kernel(%arg0: i32, %arg1: i32, %arg2: memref<16x128xbf16, #tpu.memory_space<vmem>>, %arg3: memref<128x256xbf16, #tpu.memory_space<vmem>>, %arg4: memref<16x256xbf16, #tpu.memory_space<vmem>>, %arg5: memref<16x256xf32, #tpu.memory_space<vmem>>) attributes {dimension_semantics = [#tpu.dimension_semantics<parallel>, #tpu.dimension_semantics<arbitrary>], iteration_bounds = array<i64: 1, 1>, scalar_prefetch = 0 : i64, scratch_operands = 1 : i64, tpu.core_type = #tpu.core_type<tc>, window_params = [{transform_indices = @transform_0, window_bounds = array<i64: 16, 128>}, {pipeline_mode = #tpu.pipeline_mode<synchronous>, transform_indices = @transform_1, window_bounds = array<i64: 128, 256>}, {transform_indices = @transform_2, window_bounds = array<i64: 16, 256>}]} {
    %c0_i32 = arith.constant 0 : i32
    %0 = arith.cmpi eq, %arg1, %c0_i32 : i32
    %1 = arith.extui %0 : i1 to i32
    %c0_i32_0 = arith.constant 0 : i32
    %2 = arith.cmpi ne, %1, %c0_i32_0 : i32
    scf.if %2 {
      %cst_9 = arith.constant 0.000000e+00 : f32
      %15 = vector.broadcast %cst_9 : f32 to vector<16x256xf32>
      %c0_10 = arith.constant 0 : index
      %c0_11 = arith.constant 0 : index
      %16 = vector.load %arg5[%c0_10, %c0_11] : memref<16x256xf32, #tpu.memory_space<vmem>>, vector<16x256xf32>
      tpu.vector_store %arg5[%c0_10, %c0_11], %15 {strides = array<i32>} : memref<16x256xf32, #tpu.memory_space<vmem>>, vector<16x256xf32>,
    } else {
    }
    %c128_i32 = arith.constant 128 : i32
    %3 = arith.muli %arg1, %c128_i32 : i32
    %4 = tpu.assume_multiple %3, 128 : i32
    %5 = arith.index_cast %4 : i32 to index
    %c0 = arith.constant 0 : index
    %6 = vector.load %arg3[%5, %c0] : memref<128x256xbf16, #tpu.memory_space<vmem>>, vector<128x256xbf16>
    %c0_1 = arith.constant 0 : index
    %c0_2 = arith.constant 0 : index
    %7 = vector.load %arg5[%c0_1, %c0_2] : memref<16x256xf32, #tpu.memory_space<vmem>>, vector<16x256xf32>
    %c0_3 = arith.constant 0 : index
    %c0_4 = arith.constant 0 : index
    %8 = vector.load %arg2[%c0_3, %c0_4] : memref<16x128xbf16, #tpu.memory_space<vmem>>, vector<16x128xbf16>
    %cst = arith.constant dense<0.000000e+00> : vector<16x256xf32>
    %9 = tpu.matmul %8, %6, %cst {dimension_numbers = #tpu.dot_dimension_numbers<[1], [0], [0], [1], [0, 0, 1, 1], [], []>} : vector<16x128xbf16>, vector<128x256xbf16>, vector<16x256xf32> -> vector<16x256xf32>
    %10 = arith.addf %7, %9 : vector<16x256xf32>
    %c0_5 = arith.constant 0 : index
    %c0_6 = arith.constant 0 : index
    %11 = vector.load %arg5[%c0_5, %c0_6] : memref<16x256xf32, #tpu.memory_space<vmem>>, vector<16x256xf32>
    tpu.vector_store %arg5[%c0_5, %c0_6], %10 {strides = array<i32>} : memref<16x256xf32, #tpu.memory_space<vmem>>, vector<16x256xf32>,
    %c0_i32_7 = arith.constant 0 : i32
    %12 = arith.cmpi eq, %arg1, %c0_i32_7 : i32
    %13 = arith.extui %12 : i1 to i32
    %c0_i32_8 = arith.constant 0 : i32
    %14 = arith.cmpi ne, %13, %c0_i32_8 : i32
    scf.if %14 {
      %c0_9 = arith.constant 0 : index
      %c0_10 = arith.constant 0 : index
      %15 = vector.load %arg5[%c0_9, %c0_10] : memref<16x256xf32, #tpu.memory_space<vmem>>, vector<16x256xf32>
      %16 = arith.truncf %15 : vector<16x256xf32> to vector<16x256xbf16>
      %c0_11 = arith.constant 0 : index
      %c0_12 = arith.constant 0 : index
      %17 = vector.load %arg4[%c0_11, %c0_12] : memref<16x256xbf16, #tpu.memory_space<vmem>>, vector<16x256xbf16>
      tpu.vector_store %arg4[%c0_11, %c0_12], %16 {strides = array<i32>} : memref<16x256xbf16, #tpu.memory_space<vmem>>, vector<16x256xbf16>,
    } else {
    }
    return
  }
  func.func @transform_0(%arg0: i32, %arg1: i32) -> (i32, i32) {
    %c0_i32 = arith.constant 0 : i32
    return %arg0, %arg1 : i32, i32
  }
  func.func @transform_1(%arg0: i32, %arg1: i32) -> (i32, i32) {
    %c0_i32 = arith.constant 0 : i32
    %c0_i32_0 = arith.constant 0 : i32
    %c0_i32_1 = arith.constant 0 : i32
    return %c0_i32, %c0_i32_0 : i32, i32
  }
  func.func @transform_2(%arg0: i32, %arg1: i32) -> (i32, i32) {
    %c0_i32 = arith.constant 0 : i32
    %c0_i32_0 = arith.constant 0 : i32
    return %arg0, %c0_i32 : i32, i32
  }
}

</mosaic_0001>

<llo_original>
// kernel: tpu_custom_call.1
$region0: #{tpu_custom_call.1}
  #allocation0 [shape = 'u32[]', space=smem, size = 0x4, offset = 0x4, fixed_abs, tag = 'smem constant byte address 0x4 - core index']
  #allocation1 [shape = 'u32[144,128]{1,0:T(1,128)}', space=vmem, size = 0x12000, scoped, tag = 'internal scratch']
  #allocation2 [shape = 'f32[16,256]{1,0:T(8,128)}', space=vmem, size = 0x4000, scoped, tag = 'scratch operand']
  %s0 = inlined_call_operand.hbm [shape: bf16[16,128], index: 0, kind: input, shape index: {}]
  %s1 = inlined_call_operand.hbm [shape: bf16[128,256], index: 1, kind: input, shape index: {}]
  %s2 = inlined_call_operand.hbm [shape: bf16[16,256], index: 2, kind: output, shape index: {}]
  %s3 = sld [smem:[#allocation0]]
  $region34: #{tpu_custom_call.1} parent=0
    _
  %s5 = ssub.s32 1, %s3
  %s6 = scalar_select 0, %s5, %s3
  $region1: #{tpu_custom_call.1} parent=0
    #allocation3 [shape = 'u8[4096]{0}', space=vmem, size = 0x1000, scoped, tag = 'input window, operand 0, single buffered']
    #allocation4 [shape = 's32[1]{0}', space=sflag, size = 0x4, scoped, tag = 'scoped memory for tpu_custom_call.1']
    #allocation5 [shape = 's32[1]{0}', space=sflag, size = 0x4, scoped, tag = 'scoped memory for tpu_custom_call.1']
    #allocation6 [shape = 'u8[65536]{0}', space=vmem, size = 0x10000, scoped, tag = 'input window, operand 1, single buffered']
    #allocation7 [shape = 's32[1]{0}', space=sflag, size = 0x4, scoped, tag = 'scoped memory for tpu_custom_call.1']
    #allocation8 [shape = 'u8[8192]{0}', space=vmem, size = 0x2000, scoped, tag = 'output window, operand 0, single buffered']
    %7 = vsyncpa [#allocation4], 0
    %8 = vsyncpa [#allocation7], 0
    %9 = vsyncpa [#allocation5], 0
    // Predicated region
    $region2: #{tpu_custom_call.1} parent=1 // pred_check
      _
    $region3: #{tpu_custom_call.1} parent=1 // pred_check_branch
      %11 = sbr.rel (0) target = $region5
    $region4: #{tpu_custom_call.1} parent=1 // pred_region
      %s13 = ssub.s32 128, 128
      %14 = vsyncadd [#allocation4], %s13
      %s15 = sshll.u32 [#allocation3], 4
      %s16 = int_to_ptr.vmem [resolvable:$true] %s15
      %21 = dma.hbm_to_vmem [thread:$0]  %s0, 128, %s16, [#allocation4], 64, 64, 4
    $region5: #{tpu_custom_call.1} parent=1 // pred_fallthru
      _
    // Predicated region
    $region6: #{tpu_custom_call.1} parent=1 // pred_check
      _
    $region7: #{tpu_custom_call.1} parent=1 // pred_check_branch
      %23 = sbr.rel (0) target = $region9
    $region8: #{tpu_custom_call.1} parent=1 // pred_region
      %s25 = ssub.s32 2048, 2048
      %26 = vsyncadd [#allocation7], %s25
      %s27 = sshll.u32 [#allocation6], 4
      %s28 = int_to_ptr.vmem [resolvable:$true] %s27
      %33 = dma.hbm_to_vmem [thread:$0]  %s1, 2048, %s28, [#allocation7], 128, 128, 8
    $region9: #{tpu_custom_call.1} parent=1 // pred_fallthru
      _
    // Predicated region
    $region10: #{tpu_custom_call.1} parent=1 // pred_check
      _
    $region11: #{tpu_custom_call.1} parent=1 // pred_check_branch
      %35 = sbr.rel (0) target = $region13
    $region12: #{tpu_custom_call.1} parent=1 // pred_region
      %36 = dma.done [#allocation4], 128
    $region13: #{tpu_custom_call.1} parent=1 // pred_fallthru
      _
    // Predicated region
    $region14: #{tpu_custom_call.1} parent=1 // pred_check
      _
    $region15: #{tpu_custom_call.1} parent=1 // pred_check_branch
      %38 = sbr.rel (0) target = $region17
    $region16: #{tpu_custom_call.1} parent=1 // pred_region
      %39 = dma.done [#allocation7], 2048
    $region17: #{tpu_custom_call.1} parent=1 // pred_fallthru
      _
    %p41 = scmp.eq.s32.totalorder 0, 0
    // Predicated region
    $region18: #{tpu_custom_call.1} parent=1 // pred_check
      %p42 = pneg %p41
    $region19: #{tpu_custom_call.1} parent=1 // pred_check_branch
      %44 = sbr.rel (%p42) target = $region21
    $region20: #{tpu_custom_call.1} parent=1 // pred_region
      %45 = vst [vmem:[#allocation2] sm:$0xff] 0.0
      %46 = vst [vmem:[#allocation2 + $0x8] sm:$0xff] 0.0
      %47 = vst [vmem:[#allocation2 + $0x10] sm:$0xff] 0.0
      %48 = vst [vmem:[#allocation2 + $0x18] sm:$0xff] 0.0
    $region21: #{tpu_custom_call.1} parent=1 // pred_fallthru
      _
    %s49 = smul.u32 0, 128
    %s50 = sshra.s32 %s49, 3
    %s51 = sand.u32 %s49, 7
    %s52 = smul.u32 %s50, 2
    %s53 = smul.addr %s52, 4
    %s54 = scalar_lea.vmem [#allocation6], %s53
    %v55 = vld [vmem:[%s54] sm:$0xff]
    %v56 = vld [vmem:[%s54 + $0x8] sm:$0xff]
    %v57 = vld [vmem:[%s54 + $0x10] sm:$0xff]
    %v58 = vld [vmem:[%s54 + $0x18] sm:$0xff]
    %v59 = vld [vmem:[%s54 + $0x20] sm:$0xff]
    %v60 = vld [vmem:[%s54 + $0x28] sm:$0xff]
    %v61 = vld [vmem:[%s54 + $0x30] sm:$0xff]
    %v62 = vld [vmem:[%s54 + $0x38] sm:$0xff]
    %v63 = vld [vmem:[%s54 + $0x40] sm:$0xff]
    %v64 = vld [vmem:[%s54 + $0x48] sm:$0xff]
    %v65 = vld [vmem:[%s54 + $0x50] sm:$0xff]
    %v66 = vld [vmem:[%s54 + $0x58] sm:$0xff]
    %v67 = vld [vmem:[%s54 + $0x60] sm:$0xff]
    %v68 = vld [vmem:[%s54 + $0x68] sm:$0xff]
    %v69 = vld [vmem:[%s54 + $0x70] sm:$0xff]
    %v70 = vld [vmem:[%s54 + $0x78] sm:$0xff]
    %v71 = vld [vmem:[#allocation2] sm:$0xff]
    %v72 = vld [vmem:[#allocation2 + $0x8] sm:$0xff]
    %v73 = vld [vmem:[#allocation2 + $0x10] sm:$0xff]
    %v74 = vld [vmem:[#allocation2 + $0x18] sm:$0xff]
    %v75 = vld [vmem:[#allocation3] sm:$0xf]
    %v76 = vld [vmem:[#allocation3 + $0x4] sm:$0xf]
    %v79 = vunpack.c.l.b16 %v75
    %v80 = vunpack.c.l.b16 %v76
    %v81 = vpack.c.b16 %v80, %v79
    %v99 = vunpack.c.l.b16 %v55
    %v100 = vunpack.c.h.b16 %v55
    %v101 = vunpack.c.l.b16 %v56
    %v102 = vunpack.c.h.b16 %v56
    %v103 = vunpack.c.l.b16 %v57
    %v104 = vunpack.c.h.b16 %v57
    %v105 = vunpack.c.l.b16 %v58
    %v106 = vunpack.c.h.b16 %v58
    %v107 = vunpack.c.l.b16 %v59
    %v108 = vunpack.c.h.b16 %v59
    %v109 = vunpack.c.l.b16 %v60
    %v110 = vunpack.c.h.b16 %v60
    %v111 = vunpack.c.l.b16 %v61
    %v112 = vunpack.c.h.b16 %v61
    %v113 = vunpack.c.l.b16 %v62
    %v114 = vunpack.c.h.b16 %v62
    %v115 = vunpack.c.l.b16 %v63
    %v116 = vunpack.c.h.b16 %v63
    %v117 = vunpack.c.l.b16 %v64
    %v118 = vunpack.c.h.b16 %v64
    %v119 = vunpack.c.l.b16 %v65
    %v120 = vunpack.c.h.b16 %v65
    %v121 = vunpack.c.l.b16 %v66
    %v122 = vunpack.c.h.b16 %v66
    %v123 = vunpack.c.l.b16 %v67
    %v124 = vunpack.c.h.b16 %v67
    %v125 = vunpack.c.l.b16 %v68
    %v126 = vunpack.c.h.b16 %v68
    %v127 = vunpack.c.l.b16 %v69
    %v128 = vunpack.c.h.b16 %v69
    %v129 = vunpack.c.l.b16 %v70
    %v130 = vunpack.c.h.b16 %v70
    %v131 = vpack.c.b16 %v101, %v99
    %v132 = vpack.c.b16 %v102, %v100
    %v133 = vpack.c.b16 %v105, %v103
    %v134 = vpack.c.b16 %v106, %v104
    %v135 = vpack.c.b16 %v109, %v107
    %v136 = vpack.c.b16 %v110, %v108
    %v137 = vpack.c.b16 %v113, %v111
    %v138 = vpack.c.b16 %v114, %v112
    %v139 = vpack.c.b16 %v117, %v115
    %v140 = vpack.c.b16 %v118, %v116
    %v141 = vpack.c.b16 %v121, %v119
    %v142 = vpack.c.b16 %v122, %v120
    %v143 = vpack.c.b16 %v125, %v123
    %v144 = vpack.c.b16 %v126, %v124
    %v145 = vpack.c.b16 %v129, %v127
    %v146 = vpack.c.b16 %v130, %v128
    %163 = vmatprep.subr.bf16.mxu0 %v132
    %164 = vmatpush1.bf16.msra.mxu0 %v131
    %165 = vmatprep.subr.bf16.mxu0 %v134
    %166 = vmatpush1.bf16.msra.mxu0 %v133
    %167 = vmatprep.subr.bf16.mxu0 %v136
    %168 = vmatpush1.bf16.msra.mxu0 %v135
    %169 = vmatprep.subr.bf16.mxu0 %v138
    %170 = vmatpush1.bf16.msra.mxu0 %v137
    %171 = vmatprep.subr.bf16.mxu0 %v140
    %172 = vmatpush1.bf16.msra.mxu0 %v139
    %173 = vmatprep.subr.bf16.mxu0 %v142
    %174 = vmatpush1.bf16.msra.mxu0 %v141
    %175 = vmatprep.subr.bf16.mxu0 %v144
    %176 = vmatpush1.bf16.msra.mxu0 %v143
    %177 = vmatprep.subr.bf16.mxu0 %v146
    %178 = vmatpush1.bf16.msra.mxu0 %v145
    %179 = vmatprep.subr.bf16.mxu0 0
    %180 = vmatpush1.bf16.msra.mxu0 0
    %181 = vmatprep.subr.bf16.mxu0 0
    %182 = vmatpush1.bf16.msra.mxu0 0
    %183 = vmatprep.subr.bf16.mxu0 0
    %184 = vmatpush1.bf16.msra.mxu0 0
    %185 = vmatprep.subr.bf16.mxu0 0
    %186 = vmatpush1.bf16.msra.mxu0 0
    %187 = vmatprep.subr.bf16.mxu0 0
    %188 = vmatpush1.bf16.msra.mxu0 0
    %189 = vmatprep.subr.bf16.mxu0 0
    %190 = vmatpush1.bf16.msra.mxu0 0
    %191 = vmatprep.subr.bf16.mxu0 0
    %192 = vmatpush1.bf16.msra.mxu0 0
    %193 = vmatprep.subr.bf16.mxu0 0
    %194 = vmatpush1.bf16.msra.mxu0 0
    %195 = vmatprep.mubr.bf16.mxu0 0
    %196 = vmatmul.mubr.bf16.gmra.mrb[0].mxu0 %v81
    %v197 = vpop.f32.mrb[0].mxu0
    %v198 = vadd.f32 0.0, %v197
    %v199 = vpop.f32.mrb[0].mxu0
    %v200 = vadd.f32 0.0, %v199
    %v201 = vpop.f32.mrb[0].mxu0
    %v202 = vadd.f32 0.0, %v201
    %v203 = vpop.f32.mrb[0].mxu0
    %v204 = vadd.f32 0.0, %v203
    %205 = vdwg.mxu0
    %v206 = vadd.f32 %v71, %v198
    %v207 = vadd.f32 %v72, %v200
    %v208 = vadd.f32 %v73, %v202
    %v209 = vadd.f32 %v74, %v204
    %210 = vst [vmem:[#allocation2] sm:$0xff] %v206
    %211 = vst [vmem:[#allocation2 + $0x8] sm:$0xff] %v207
    %212 = vst [vmem:[#allocation2 + $0x10] sm:$0xff] %v208
    %213 = vst [vmem:[#allocation2 + $0x18] sm:$0xff] %v209
    // Predicated region
    $region22: #{tpu_custom_call.1} parent=1 // pred_check
      %p214 = pneg %p41
    $region23: #{tpu_custom_call.1} parent=1 // pred_check_branch
      %216 = sbr.rel (%p214) target = $region25
    $region24: #{tpu_custom_call.1} parent=1 // pred_region
      %v217 = vld [vmem:[#allocation2] sm:$0xff]
      %v218 = vld [vmem:[#allocation2 + $0x8] sm:$0xff]
      %v219 = vld [vmem:[#allocation2 + $0x10] sm:$0xff]
      %v220 = vld [vmem:[#allocation2 + $0x18] sm:$0xff]
      %v221 = vpack.c.bf16 %v219, %v217
      %v222 = vpack.c.bf16 %v220, %v218
      %v225 = vunpack.c.l.b16 %v221
      %v226 = vunpack.c.l.b16 %v222
      %v227 = vunpack.c.h.b16 %v221
      %v228 = vunpack.c.h.b16 %v222
      %v229 = vpack.c.b16 %v226, %v225
      %v230 = vpack.c.b16 %v228, %v227
      %233 = vst [vmem:[#allocation8] sm:$0xff] %v229
      %234 = vst [vmem:[#allocation8 + $0x8] sm:$0xff] %v230
    $region25: #{tpu_custom_call.1} parent=1 // pred_fallthru
      _
    // Predicated region
    $region26: #{tpu_custom_call.1} parent=1 // pred_check
      _
    $region27: #{tpu_custom_call.1} parent=1 // pred_check_branch
      %236 = sbr.rel (0) target = $region29
    $region28: #{tpu_custom_call.1} parent=1 // pred_region
      %s238 = ssub.s32 256, 256
      %239 = vsyncadd [#allocation5], %s238
      %s240 = sshll.u32 [#allocation8], 4
      %s241 = int_to_ptr.vmem [resolvable:$true] %s240
      %246 = dma.vmem_to_hbm [thread:$0]  %s241, 256, %s2, [#allocation5], 128, 128, 8
    $region29: #{tpu_custom_call.1} parent=1 // pred_fallthru
      _
    // Predicated region
    $region30: #{tpu_custom_call.1} parent=1 // pred_check
      _
    $region31: #{tpu_custom_call.1} parent=1 // pred_check_branch
      %248 = sbr.rel (0) target = $region33
    $region32: #{tpu_custom_call.1} parent=1 // pred_region
      %249 = dma.done [#allocation5], 256
    $region33: #{tpu_custom_call.1} parent=1 // pred_fallthru
      _
    %250 = vsyncpa [#allocation4], 1
    %251 = vsyncpa [#allocation7], 1
    %252 = vsyncpa [#allocation5], 1

</llo_original>
